<compile_context>
chip_gen: v6e
topology: v6e:2x2x1
jax: 0.10.0
libtpu: 0.0.40
codegen_flags: <defaults>
</compile_context>

<pallas_src>
import functools

import jax
import jax.numpy as jnp
from jax.experimental import pallas as pl
from jax.experimental.pallas import tpu as pltpu


_COORD_COLS = 8  # cols 0..2 = [posx, posy, 1]; lane-padded to 128 in VMEM anyway


def _ssam_kernel(x_ref, coords_ref, o_ref, *, inv_hw):
    """One tile of independent rows.

    x_ref:      (TN, S_pad)            activations (any float dtype; math in f32)
    coords_ref: (S_pad, _COORD_COLS)   f32, columns [posx, posy, 1, 0, ...]
    o_ref:      (TN, 2)                f32, per-row expected (x, y)
    """
    x = x_ref[...].astype(jnp.float32)                        # (TN, S)
    m = jnp.max(x, axis=-1, keepdims=True)                    # (TN, 1)  XLU
    e = jnp.exp(x - m)                                        # (TN, S)  EUP/VPU
    # One MXU matmul fuses sum(e), sum(e*posx), sum(e*posy). Full f32 precision so
    # the result matches the exact softmax-weighted mean to ~1e-7.
    sums = jnp.dot(e, coords_ref[...],
                   preferred_element_type=jnp.float32,
                   precision=jax.lax.Precision.HIGHEST)       # (TN, _COORD_COLS)
    denom = sums[:, 2:3]                                      # (TN, 1)
    # Deferred, EXACT normalization: softmax divide + 1/(H*W) mean in one per-row
    # scale (only TN values -> negligible cost; no approximate reciprocal).
    o_ref[...] = (sums[:, 0:2] * (inv_hw / denom)).astype(o_ref.dtype)


def _round_up(v, m):
    return -(-v // m) * m


def _vmem_capacity_bytes():
    try:
        return int(pltpu.get_tpu_info().vmem_capacity_bytes)
    except Exception:
        return 64 << 20  # conservative fallback: v7x per-TensorCore VMEM


def _choose_row_tile(n_rows_padded, s_pad, itemsize, row_mult, budget_bytes):
    """Row-tile heuristic: ~2 MiB input blocks, VMEM-safe (counting f32 temps and
    the double-buffered coords), >= 8 grid steps and an even step count when the
    problem is large enough (keeps both v7x TensorCores busy and overlapped)."""
    n_r = n_rows_padded
    coords_bytes = 2 * s_pad * 128 * 4              # double-buffered, lane-padded
    budget = max(budget_bytes - coords_bytes, 2 << 20)
    # Per-row footprint: double-buffered input + ~3 f32 temps (upcast, exp, staging).
    per_row = 2 * itemsize * s_pad + 3 * 4 * s_pad
    rows_vmem = max(row_mult, budget // per_row // row_mult * row_mult)
    # ~2 MiB per input buffer already reaches ~85% of the HBM roofline; bigger tiles
    # only grow the exposed prologue DMA and the VMEM / intermediate pressure.
    rows_buf = max(row_mult, (2 << 20) // (itemsize * s_pad) // row_mult * row_mult)
    row_tile = min(rows_vmem, rows_buf, n_r)

    # Prefer >= 8 grid steps when there is enough work to amortize per-step cost.
    if n_r >= 8 * row_mult and -(-n_r // row_tile) < 8:
        row_tile = min(row_tile, _round_up(-(-n_r // 8), row_mult))

    # Even step count (two v7x TensorCores equally loaded) by shrinking the tile a
    # little; never by padding extra HBM traffic.
    steps = -(-n_r // row_tile)
    if steps >= 3 and steps % 2 == 1:
        lo = max(row_mult, row_tile // 2)
        rt = row_tile - row_mult
        while rt >= lo and -(-n_r // rt) % 2 == 1:
            rt -= row_mult
        if rt >= lo and -(-n_r // rt) % 2 == 0:
            row_tile = rt
    return row_tile


def spatial_soft_argmax(x):
    """x: (B, C, H, W) float (f32 or bf16) -> (B, C, 2) float32."""
    B, C, H, W = x.shape
    N, S = B * C, H * W
    S_pad = _round_up(S, 128)

    x_flat = x.reshape(N, S)
    if S_pad != S:
        # Lane-align the MXU contraction dim; exp(-inf - m) == 0 exactly, so padded
        # columns never contribute. (Feed H*W % 128 == 0 upstream to skip this copy.)
        x_flat = jnp.pad(x_flat, ((0, 0), (0, S_pad - S)),
                         constant_values=float("-inf"))

    itemsize = jnp.dtype(x.dtype).itemsize
    packing = max(1, 4 // itemsize)
    row_mult = 8 * packing                   # sublane multiple for this dtype
    n_r = _round_up(N, row_mult)
    if n_r != N:
        x_flat = jnp.pad(x_flat, ((0, n_r - N), (0, 0)))  # zero rows, sliced off below

    # Coordinate matrix: col 0 = posx (varies along H), col 1 = posy (varies along W),
    # col 2 = 1 (softmax denominator); remaining columns / padded rows are zero.
    posx = jnp.linspace(-1.0, 1.0, H, dtype=jnp.float32)
    posy = jnp.linspace(-1.0, 1.0, W, dtype=jnp.float32)
    cx = jnp.broadcast_to(posx[:, None], (H, W)).reshape(S)
    cy = jnp.broadcast_to(posy[None, :], (H, W)).reshape(S)
    coords = jnp.zeros((S_pad, _COORD_COLS), dtype=jnp.float32)
    coords = coords.at[:S, 0].set(cx).at[:S, 1].set(cy).at[:S, 2].set(1.0)

    capacity = _vmem_capacity_bytes()
    working_budget = min(capacity // 4, 20 << 20)
    row_tile = _choose_row_tile(n_r, S_pad, itemsize, row_mult, working_budget)
    grid = (pl.cdiv(n_r, row_tile),)

    est = (2 * row_tile * S_pad * itemsize   # double-buffered input blocks
           + 2 * S_pad * 128 * 4             # coords (constant index -> fetched once)
           + 3 * 4 * row_tile * S_pad        # f32 intermediates
           + (1 << 20))
    vmem_limit = int(min(max(2 * est, 24 << 20), min(48 << 20, capacity * 3 // 4)))

    kernel = functools.partial(_ssam_kernel, inv_hw=1.0 / float(S))
    out = pl.pallas_call(
        kernel,
        out_shape=jax.ShapeDtypeStruct((n_r, 2), jnp.float32),
        grid=grid,
        in_specs=[
            pl.BlockSpec((row_tile, S_pad), lambda i: (i, 0)),
            pl.BlockSpec((S_pad, _COORD_COLS), lambda i: (0, 0)),  # fetched once
        ],
        out_specs=pl.BlockSpec((row_tile, 2), lambda i: (i, 0)),
        compiler_params=pltpu.CompilerParams(
            dimension_semantics=("parallel",),
            vmem_limit_bytes=vmem_limit,
        ),
    )(x_flat, coords)

    return out[:N].reshape(B, C, 2)


def _reference(x):
    """Pure-JAX reference mirroring the PyTorch forward."""
    B, C, H, W = x.shape
    p = jax.nn.softmax(x.reshape(B * C, H * W).astype(jnp.float32), axis=1)
    p = p.reshape(B, C, H, W, 1)
    posx = jnp.linspace(-1.0, 1.0, H, dtype=jnp.float32)
    posy = jnp.linspace(-1.0, 1.0, W, dtype=jnp.float32)
    gx, gy = jnp.meshgrid(posx, posy, indexing="ij")               # (H, W) each
    coords = jnp.stack([gx, gy], axis=2)[None, None]               # (1, 1, H, W, 2)
    return jnp.mean(p * coords, axis=(2, 3))                       # (B, C, 2)


if __name__ == "__main__":
    key = jax.random.PRNGKey(0)
    k1, k2 = jax.random.split(key)

    # Primary check: small shape consistent with the module (aligned H*W).
    B, C, H, W = 2, 4, 16, 16
    x = jax.random.normal(k1, (B, C, H, W), dtype=jnp.float32)
    out = jax.block_until_ready(spatial_soft_argmax(x))
    ref = _reference(x)
    assert out.shape == (B, C, 2), out.shape
    assert jnp.allclose(out, ref, atol=5e-6, rtol=5e-4), float(
        jnp.max(jnp.abs(out - ref))
    )

    # Secondary check: odd spatial extent (H*W % 128 != 0) and B*C not a multiple
    # of 8 (exercises the -inf lane padding and the row-padding tail).
    B2, C2, H2, W2 = 2, 5, 15, 9
    x2 = jax.random.normal(k2, (B2, C2, H2, W2), dtype=jnp.float32)
    out2 = jax.block_until_ready(spatial_soft_argmax(x2))
    ref2 = _reference(x2)
    assert out2.shape == (B2, C2, 2), out2.shape
    assert jnp.allclose(out2, ref2, atol=5e-6, rtol=5e-4), float(
        jnp.max(jnp.abs(out2 - ref2))
    )

    # bf16 activations are accepted directly (kernel upcasts internally).
    x3 = x.astype(jnp.bfloat16)
    out3 = jax.block_until_ready(spatial_soft_argmax(x3))
    ref3 = _reference(x3.astype(jnp.float32))
    assert jnp.allclose(out3, ref3, atol=5e-6, rtol=5e-4), float(
        jnp.max(jnp.abs(out3 - ref3))
    )

    print("KERNEL_OK")
</pallas_src>

<mosaic_0001>
module attributes {stable_mosaic.version = 11 : i64} {
  func.func @_ssam_kernel(%arg0: i32, %arg1: memref<8x256xf32, #tpu.memory_space<vmem>>, %arg2: memref<256x8xf32, #tpu.memory_space<vmem>>, %arg3: memref<8x2xf32, #tpu.memory_space<vmem>>) attributes {dimension_semantics = [#tpu.dimension_semantics<parallel>], iteration_bounds = array<i64: 1>, scalar_prefetch = 0 : i64, scratch_operands = 0 : i64, tpu.core_type = #tpu.core_type<tc>, window_params = [{transform_indices = @transform_0, window_bounds = array<i64: 8, 256>}, {pipeline_mode = #tpu.pipeline_mode<synchronous>, transform_indices = @transform_1, window_bounds = array<i64: 256, 8>}, {transform_indices = @transform_2, window_bounds = array<i64: 8, 2>}]} {
    %c0 = arith.constant 0 : index
    %c0_0 = arith.constant 0 : index
    %0 = vector.load %arg1[%c0, %c0_0] : memref<8x256xf32, #tpu.memory_space<vmem>>, vector<8x256xf32>
    %cst = arith.constant dense<0xFF800000> : vector<8xf32>
    %1 = vector.multi_reduction <maximumf>, %0, %cst [1] : vector<8x256xf32> to vector<8xf32>
    %2 = vector.shape_cast %1 : vector<8xf32> to vector<8x1xf32>
    %3 = vector.broadcast %2 : vector<8x1xf32> to vector<8x256xf32>
    %4 = arith.subf %0, %3 : vector<8x256xf32>
    %5 = math.exp %4 : vector<8x256xf32>
    %c0_1 = arith.constant 0 : index
    %c0_2 = arith.constant 0 : index
    %6 = vector.load %arg2[%c0_1, %c0_2] : memref<256x8xf32, #tpu.memory_space<vmem>>, vector<256x8xf32>
    %cst_3 = arith.constant dense<0.000000e+00> : vector<8x8xf32>
    %7 = tpu.matmul %5, %6, %cst_3 {dimension_numbers = #tpu.dot_dimension_numbers<[1], [0], [0], [1], [0, 0, 1, 1], [], []>, precision = #tpu.contract_precision<fp32>} : vector<8x256xf32>, vector<256x8xf32>, vector<8x8xf32> -> vector<8x8xf32>
    %8 = vector.extract_strided_slice %7 {offsets = [0, 2], sizes = [8, 1], strides = [1, 1]} : vector<8x8xf32> to vector<8x1xf32>
    %9 = vector.extract_strided_slice %7 {offsets = [0, 0], sizes = [8, 2], strides = [1, 1]} : vector<8x8xf32> to vector<8x2xf32>
    %cst_4 = arith.constant 3.906250e-03 : f32
    %10 = vector.broadcast %cst_4 : f32 to vector<8x1xf32>
    %11 = arith.divf %10, %8 : vector<8x1xf32>
    %12 = vector.broadcast %11 : vector<8x1xf32> to vector<8x2xf32>
    %13 = arith.mulf %9, %12 : vector<8x2xf32>
    %c0_5 = arith.constant 0 : index
    %c0_6 = arith.constant 0 : index
    %14 = vector.load %arg3[%c0_5, %c0_6] : memref<8x2xf32, #tpu.memory_space<vmem>>, vector<8x2xf32>
    tpu.vector_store %arg3[%c0_5, %c0_6], %13 {strides = array<i32>} : memref<8x2xf32, #tpu.memory_space<vmem>>, vector<8x2xf32>,
    return
  }
  func.func @transform_0(%arg0: i32) -> (i32, i32) {
    %c0_i32 = arith.constant 0 : i32
    %c0_i32_0 = arith.constant 0 : i32
    return %arg0, %c0_i32 : i32, i32
  }
  func.func @transform_1(%arg0: i32) -> (i32, i32) {
    %c0_i32 = arith.constant 0 : i32
    %c0_i32_0 = arith.constant 0 : i32
    %c0_i32_1 = arith.constant 0 : i32
    return %c0_i32, %c0_i32_0 : i32, i32
  }
  func.func @transform_2(%arg0: i32) -> (i32, i32) {
    %c0_i32 = arith.constant 0 : i32
    %c0_i32_0 = arith.constant 0 : i32
    return %arg0, %c0_i32 : i32, i32
  }
}

</mosaic_0001>

<llo_original>
// kernel: tpu_custom_call.1
$region0: #{tpu_custom_call.1}
  #allocation0 [shape = 'u32[]', space=smem, size = 0x4, offset = 0x4, fixed_abs, tag = 'smem constant byte address 0x4 - core index']
  #allocation1 [shape = 'u32[144,128]{1,0:T(1,128)}', space=vmem, size = 0x12000, scoped, tag = 'internal scratch']
  %s0 = inlined_call_operand.vmem [shape: f32[8,256], index: 0, kind: input, shape index: {}]
  %s1 = inlined_call_operand.vmem [shape: f32[256,8], index: 1, kind: input, shape index: {}]
  %s2 = inlined_call_operand.vmem [shape: f32[8,2], index: 2, kind: output, shape index: {}]
  %s3 = sld [smem:[#allocation0]]
  $region18: #{tpu_custom_call.1} parent=0
    _
  %s5 = ssub.s32 1, %s3
  %s6 = scalar_select 0, %s5, %s3
  // Predicated region
  $region2: #{tpu_custom_call.1} parent=0 // pred_check
    _
  $region3: #{tpu_custom_call.1} parent=0 // pred_check_branch
    %8 = sbr.rel (0) target = $region5
  $region4: #{tpu_custom_call.1} parent=0 // pred_region
    _
  $region5: #{tpu_custom_call.1} parent=0 // pred_fallthru
    _
  // Predicated region
  $region6: #{tpu_custom_call.1} parent=0 // pred_check
    _
  $region7: #{tpu_custom_call.1} parent=0 // pred_check_branch
    %10 = sbr.rel (0) target = $region9
  $region8: #{tpu_custom_call.1} parent=0 // pred_region
    _
  $region9: #{tpu_custom_call.1} parent=0 // pred_fallthru
    _
  %v11 = vld [vmem:[%s0] sm:$0xff]
  %v12 = vld [vmem:[%s0 + $0x8] sm:$0xff]
  %v13 = vmax.f32 %v11, %v12
  %14 = vmax.xlane.f32.xlu0 %v13
  %v15 = vpop.xlane.xlu0 %14
  %v16 = vsub.f32 %v11, %v15
  %v17 = vsub.f32 %v12, %v15
  %v18 = vmul.f32 %v16, 1.442695
  %v19 = vpow.pop %v18
  %v20 = vmul.f32 %v17, 1.442695
  %v21 = vpow.pop %v20
  %v22 = vld [vmem:[%s1] sm:$0xff]
  %v23 = vld [vmem:[%s1 + $0x8] sm:$0xff]
  %v24 = vld [vmem:[%s1 + $0x10] sm:$0xff]
  %v25 = vld [vmem:[%s1 + $0x18] sm:$0xff]
  %v26 = vld [vmem:[%s1 + $0x20] sm:$0xff]
  %v27 = vld [vmem:[%s1 + $0x28] sm:$0xff]
  %v28 = vld [vmem:[%s1 + $0x30] sm:$0xff]
  %v29 = vld [vmem:[%s1 + $0x38] sm:$0xff]
  %v30 = vld [vmem:[%s1 + $0x40] sm:$0xff]
  %v31 = vld [vmem:[%s1 + $0x48] sm:$0xff]
  %v32 = vld [vmem:[%s1 + $0x50] sm:$0xff]
  %v33 = vld [vmem:[%s1 + $0x58] sm:$0xff]
  %v34 = vld [vmem:[%s1 + $0x60] sm:$0xff]
  %v35 = vld [vmem:[%s1 + $0x68] sm:$0xff]
  %v36 = vld [vmem:[%s1 + $0x70] sm:$0xff]
  %v37 = vld [vmem:[%s1 + $0x78] sm:$0xff]
  %v38 = vld [vmem:[%s1 + $0x80] sm:$0xff]
  %v39 = vld [vmem:[%s1 + $0x88] sm:$0xff]
  %v40 = vld [vmem:[%s1 + $0x90] sm:$0xff]
  %v41 = vld [vmem:[%s1 + $0x98] sm:$0xff]
  %v42 = vld [vmem:[%s1 + $0xa0] sm:$0xff]
  %v43 = vld [vmem:[%s1 + $0xa8] sm:$0xff]
  %v44 = vld [vmem:[%s1 + $0xb0] sm:$0xff]
  %v45 = vld [vmem:[%s1 + $0xb8] sm:$0xff]
  %v46 = vld [vmem:[%s1 + $0xc0] sm:$0xff]
  %v47 = vld [vmem:[%s1 + $0xc8] sm:$0xff]
  %v48 = vld [vmem:[%s1 + $0xd0] sm:$0xff]
  %v49 = vld [vmem:[%s1 + $0xd8] sm:$0xff]
  %v50 = vld [vmem:[%s1 + $0xe0] sm:$0xff]
  %v51 = vld [vmem:[%s1 + $0xe8] sm:$0xff]
  %v52 = vld [vmem:[%s1 + $0xf0] sm:$0xff]
  %v53 = vld [vmem:[%s1 + $0xf8] sm:$0xff]
  %54 = vmatprep.subr.mxu0 0.0
  %v55 = vand.u32 %v37, 4294901760
  %56 = vmatpush1.msra.mxu0 %v55
  %57 = vmatprep.subr.mxu0 0.0
  %v58 = vand.u32 %v36, 4294901760
  %59 = vmatpush1.msra.mxu0 %v58
  %60 = vmatprep.subr.mxu0 0.0
  %v61 = vand.u32 %v35, 4294901760
  %62 = vmatpush1.msra.mxu0 %v61
  %63 = vmatprep.subr.mxu0 0.0
  %v64 = vand.u32 %v34, 4294901760
  %65 = vmatpush1.msra.mxu0 %v64
  %66 = vmatprep.subr.mxu0 0.0
  %v67 = vand.u32 %v33, 4294901760
  %68 = vmatpush1.msra.mxu0 %v67
  %69 = vmatprep.subr.mxu0 0.0
  %v70 = vand.u32 %v32, 4294901760
  %71 = vmatpush1.msra.mxu0 %v70
  %72 = vmatprep.subr.mxu0 0.0
  %v73 = vand.u32 %v31, 4294901760
  %74 = vmatpush1.msra.mxu0 %v73
  %75 = vmatprep.subr.mxu0 0.0
  %v76 = vand.u32 %v30, 4294901760
  %77 = vmatpush1.msra.mxu0 %v76
  %78 = vmatprep.subr.mxu0 0.0
  %v79 = vand.u32 %v29, 4294901760
  %80 = vmatpush1.msra.mxu0 %v79
  %81 = vmatprep.subr.mxu0 0.0
  %v82 = vand.u32 %v28, 4294901760
  %83 = vmatpush1.msra.mxu0 %v82
  %84 = vmatprep.subr.mxu0 0.0
  %v85 = vand.u32 %v27, 4294901760
  %86 = vmatpush1.msra.mxu0 %v85
  %87 = vmatprep.subr.mxu0 0.0
  %v88 = vand.u32 %v26, 4294901760
  %89 = vmatpush1.msra.mxu0 %v88
  %90 = vmatprep.subr.mxu0 0.0
  %v91 = vand.u32 %v25, 4294901760
  %92 = vmatpush1.msra.mxu0 %v91
  %93 = vmatprep.subr.mxu0 0.0
  %v94 = vand.u32 %v24, 4294901760
  %95 = vmatpush1.msra.mxu0 %v94
  %96 = vmatprep.subr.mxu0 0.0
  %v97 = vand.u32 %v23, 4294901760
  %98 = vmatpush1.msra.mxu0 %v97
  %99 = vmatprep.subr.mxu0 0.0
  %v100 = vand.u32 %v22, 4294901760
  %101 = vmatpush1.msra.mxu0 %v100
  %102 = vmatprep.subr.mxu0 0.0
  %v103 = vand.u32 %v53, 4294901760
  %104 = vmatpush2.msra.mxu0 %v103
  %105 = vmatprep.subr.mxu0 0.0
  %v106 = vand.u32 %v52, 4294901760
  %107 = vmatpush2.msra.mxu0 %v106
  %108 = vmatprep.subr.mxu0 0.0
  %v109 = vand.u32 %v51, 4294901760
  %110 = vmatpush2.msra.mxu0 %v109
  %111 = vmatprep.subr.mxu0 0.0
  %v112 = vand.u32 %v50, 4294901760
  %113 = vmatpush2.msra.mxu0 %v112
  %114 = vmatprep.subr.mxu0 0.0
  %v115 = vand.u32 %v49, 4294901760
  %116 = vmatpush2.msra.mxu0 %v115
  %117 = vmatprep.subr.mxu0 0.0
  %v118 = vand.u32 %v48, 4294901760
  %119 = vmatpush2.msra.mxu0 %v118
  %120 = vmatprep.subr.mxu0 0.0
  %v121 = vand.u32 %v47, 4294901760
  %122 = vmatpush2.msra.mxu0 %v121
  %123 = vmatprep.subr.mxu0 0.0
  %v124 = vand.u32 %v46, 4294901760
  %125 = vmatpush2.msra.mxu0 %v124
  %126 = vmatprep.subr.mxu0 0.0
  %v127 = vand.u32 %v45, 4294901760
  %128 = vmatpush2.msra.mxu0 %v127
  %129 = vmatprep.subr.mxu0 0.0
  %v130 = vand.u32 %v44, 4294901760
  %131 = vmatpush2.msra.mxu0 %v130
  %132 = vmatprep.subr.mxu0 0.0
  %v133 = vand.u32 %v43, 4294901760
  %134 = vmatpush2.msra.mxu0 %v133
  %135 = vmatprep.subr.mxu0 0.0
  %v136 = vand.u32 %v42, 4294901760
  %137 = vmatpush2.msra.mxu0 %v136
  %138 = vmatprep.subr.mxu0 0.0
  %v139 = vand.u32 %v41, 4294901760
  %140 = vmatpush2.msra.mxu0 %v139
  %141 = vmatprep.subr.mxu0 0.0
  %v142 = vand.u32 %v40, 4294901760
  %143 = vmatpush2.msra.mxu0 %v142
  %144 = vmatprep.subr.mxu0 0.0
  %v145 = vand.u32 %v39, 4294901760
  %146 = vmatpush2.msra.mxu0 %v145
  %147 = vmatprep.subr.mxu0 0.0
  %v148 = vand.u32 %v38, 4294901760
  %149 = vmatpush2.msra.mxu0 %v148
  %v150 = vand.u32 %v21, 4294901760
  %v151 = vsub.f32 %v21, %v150
  %v152 = vand.u32 %v151, 4294901760
  %v153 = vsub.f32 %v151, %v152
  %v154 = vand.u32 %v153, 4294901760
  %155 = vmatprep.mubr.f32.mxu0 %v154
  %v156 = vand.u32 %v19, 4294901760
  %v157 = vsub.f32 %v19, %v156
  %v158 = vand.u32 %v157, 4294901760
  %v159 = vsub.f32 %v157, %v158
  %v160 = vand.u32 %v159, 4294901760
  %161 = vmatmul.mubr.f32.gmra.mxu0 %v160
  %v162 = vpop.f32.mrf.mxu0
  %v163 = vadd.f32 0.0, %v162
  %v164 = vpop.f32.mrf.mxu0
  %165 = vdwg.mxu0
  %166 = vmatprep.subr.mxu0 0.0
  %v167 = vand.u32 %v37, 4294901760
  %v168 = vsub.f32 %v37, %v167
  %v169 = vand.u32 %v168, 4294901760
  %v170 = vsub.f32 %v168, %v169
  %v171 = vand.u32 %v170, 4294901760
  %172 = vmatpush1.msra.mxu0 %v171
  %173 = vmatprep.subr.mxu0 0.0
  %v174 = vand.u32 %v36, 4294901760
  %v175 = vsub.f32 %v36, %v174
  %v176 = vand.u32 %v175, 4294901760
  %v177 = vsub.f32 %v175, %v176
  %v178 = vand.u32 %v177, 4294901760
  %179 = vmatpush1.msra.mxu0 %v178
  %180 = vmatprep.subr.mxu0 0.0
  %v181 = vand.u32 %v35, 4294901760
  %v182 = vsub.f32 %v35, %v181
  %v183 = vand.u32 %v182, 4294901760
  %v184 = vsub.f32 %v182, %v183
  %v185 = vand.u32 %v184, 4294901760
  %186 = vmatpush1.msra.mxu0 %v185
  %187 = vmatprep.subr.mxu0 0.0
  %v188 = vand.u32 %v34, 4294901760
  %v189 = vsub.f32 %v34, %v188
  %v190 = vand.u32 %v189, 4294901760
  %v191 = vsub.f32 %v189, %v190
  %v192 = vand.u32 %v191, 4294901760
  %193 = vmatpush1.msra.mxu0 %v192
  %194 = vmatprep.subr.mxu0 0.0
  %v195 = vand.u32 %v33, 4294901760
  %v196 = vsub.f32 %v33, %v195
  %v197 = vand.u32 %v196, 4294901760
  %v198 = vsub.f32 %v196, %v197
  %v199 = vand.u32 %v198, 4294901760
  %200 = vmatpush1.msra.mxu0 %v199
  %201 = vmatprep.subr.mxu0 0.0
  %v202 = vand.u32 %v32, 4294901760
  %v203 = vsub.f32 %v32, %v202
  %v204 = vand.u32 %v203, 4294901760
  %v205 = vsub.f32 %v203, %v204
  %v206 = vand.u32 %v205, 4294901760
  %207 = vmatpush1.msra.mxu0 %v206
  %208 = vmatprep.subr.mxu0 0.0
  %v209 = vand.u32 %v31, 4294901760
  %v210 = vsub.f32 %v31, %v209
  %v211 = vand.u32 %v210, 4294901760
  %v212 = vsub.f32 %v210, %v211
  %v213 = vand.u32 %v212, 4294901760
  %214 = vmatpush1.msra.mxu0 %v213
  %215 = vmatprep.subr.mxu0 0.0
  %v216 = vand.u32 %v30, 4294901760
  %v217 = vsub.f32 %v30, %v216
  %v218 = vand.u32 %v217, 4294901760
  %v219 = vsub.f32 %v217, %v218
  %v220 = vand.u32 %v219, 4294901760
  %221 = vmatpush1.msra.mxu0 %v220
  %222 = vmatprep.subr.mxu0 0.0
  %v223 = vand.u32 %v29, 4294901760
  %v224 = vsub.f32 %v29, %v223
  %v225 = vand.u32 %v224, 4294901760
  %v226 = vsub.f32 %v224, %v225
  %v227 = vand.u32 %v226, 4294901760
  %228 = vmatpush1.msra.mxu0 %v227
  %229 = vmatprep.subr.mxu0 0.0
  %v230 = vand.u32 %v28, 4294901760
  %v231 = vsub.f32 %v28, %v230
  %v232 = vand.u32 %v231, 4294901760
  %v233 = vsub.f32 %v231, %v232
  %v234 = vand.u32 %v233, 4294901760
  %235 = vmatpush1.msra.mxu0 %v234
  %236 = vmatprep.subr.mxu0 0.0
  %v237 = vand.u32 %v27, 4294901760
  %v238 = vsub.f32 %v27, %v237
  %v239 = vand.u32 %v238, 4294901760
  %v240 = vsub.f32 %v238, %v239
  %v241 = vand.u32 %v240, 4294901760
  %242 = vmatpush1.msra.mxu0 %v241
  %243 = vmatprep.subr.mxu0 0.0
  %v244 = vand.u32 %v26, 4294901760
  %v245 = vsub.f32 %v26, %v244
  %v246 = vand.u32 %v245, 4294901760
  %v247 = vsub.f32 %v245, %v246
  %v248 = vand.u32 %v247, 4294901760
  %249 = vmatpush1.msra.mxu0 %v248
  %250 = vmatprep.subr.mxu0 0.0
  %v251 = vand.u32 %v25, 4294901760
  %v252 = vsub.f32 %v25, %v251
  %v253 = vand.u32 %v252, 4294901760
  %v254 = vsub.f32 %v252, %v253
  %v255 = vand.u32 %v254, 4294901760
  %256 = vmatpush1.msra.mxu0 %v255
  %257 = vmatprep.subr.mxu0 0.0
  %v258 = vand.u32 %v24, 4294901760
  %v259 = vsub.f32 %v24, %v258
  %v260 = vand.u32 %v259, 4294901760
  %v261 = vsub.f32 %v259, %v260
  %v262 = vand.u32 %v261, 4294901760
  %263 = vmatpush1.msra.mxu0 %v262
  %264 = vmatprep.subr.mxu0 0.0
  %v265 = vand.u32 %v23, 4294901760
  %v266 = vsub.f32 %v23, %v265
  %v267 = vand.u32 %v266, 4294901760
  %v268 = vsub.f32 %v266, %v267
  %v269 = vand.u32 %v268, 4294901760
  %270 = vmatpush1.msra.mxu0 %v269
  %271 = vmatprep.subr.mxu0 0.0
  %v272 = vand.u32 %v22, 4294901760
  %v273 = vsub.f32 %v22, %v272
  %v274 = vand.u32 %v273, 4294901760
  %v275 = vsub.f32 %v273, %v274
  %v276 = vand.u32 %v275, 4294901760
  %277 = vmatpush1.msra.mxu0 %v276
  %278 = vmatprep.subr.mxu0 0.0
  %v279 = vand.u32 %v53, 4294901760
  %v280 = vsub.f32 %v53, %v279
  %v281 = vand.u32 %v280, 4294901760
  %v282 = vsub.f32 %v280, %v281
  %v283 = vand.u32 %v282, 4294901760
  %284 = vmatpush2.msra.mxu0 %v283
  %285 = vmatprep.subr.mxu0 0.0
  %v286 = vand.u32 %v52, 4294901760
  %v287 = vsub.f32 %v52, %v286
  %v288 = vand.u32 %v287, 4294901760
  %v289 = vsub.f32 %v287, %v288
  %v290 = vand.u32 %v289, 4294901760
  %291 = vmatpush2.msra.mxu0 %v290
  %292 = vmatprep.subr.mxu0 0.0
  %v293 = vand.u32 %v51, 4294901760
  %v294 = vsub.f32 %v51, %v293
  %v295 = vand.u32 %v294, 4294901760
  %v296 = vsub.f32 %v294, %v295
  %v297 = vand.u32 %v296, 4294901760
  %298 = vmatpush2.msra.mxu0 %v297
  %299 = vmatprep.subr.mxu0 0.0
  %v300 = vand.u32 %v50, 4294901760
  %v301 = vsub.f32 %v50, %v300
  %v302 = vand.u32 %v301, 4294901760
  %v303 = vsub.f32 %v301, %v302
  %v304 = vand.u32 %v303, 4294901760
  %305 = vmatpush2.msra.mxu0 %v304
  %306 = vmatprep.subr.mxu0 0.0
  %v307 = vand.u32 %v49, 4294901760
  %v308 = vsub.f32 %v49, %v307
  %v309 = vand.u32 %v308, 4294901760
  %v310 = vsub.f32 %v308, %v309
  %v311 = vand.u32 %v310, 4294901760
  %312 = vmatpush2.msra.mxu0 %v311
  %313 = vmatprep.subr.mxu0 0.0
  %v314 = vand.u32 %v48, 4294901760
  %v315 = vsub.f32 %v48, %v314
  %v316 = vand.u32 %v315, 4294901760
  %v317 = vsub.f32 %v315, %v316
  %v318 = vand.u32 %v317, 4294901760
  %319 = vmatpush2.msra.mxu0 %v318
  %320 = vmatprep.subr.mxu0 0.0
  %v321 = vand.u32 %v47, 4294901760
  %v322 = vsub.f32 %v47, %v321
  %v323 = vand.u32 %v322, 4294901760
  %v324 = vsub.f32 %v322, %v323
  %v325 = vand.u32 %v324, 4294901760
  %326 = vmatpush2.msra.mxu0 %v325
  %327 = vmatprep.subr.mxu0 0.0
  %v328 = vand.u32 %v46, 4294901760
  %v329 = vsub.f32 %v46, %v328
  %v330 = vand.u32 %v329, 4294901760
  %v331 = vsub.f32 %v329, %v330
  %v332 = vand.u32 %v331, 4294901760
  %333 = vmatpush2.msra.mxu0 %v332
  %334 = vmatprep.subr.mxu0 0.0
  %v335 = vand.u32 %v45, 4294901760
  %v336 = vsub.f32 %v45, %v335
  %v337 = vand.u32 %v336, 4294901760
  %v338 = vsub.f32 %v336, %v337
  %v339 = vand.u32 %v338, 4294901760
  %340 = vmatpush2.msra.mxu0 %v339
  %341 = vmatprep.subr.mxu0 0.0
  %v342 = vand.u32 %v44, 4294901760
  %v343 = vsub.f32 %v44, %v342
  %v344 = vand.u32 %v343, 4294901760
  %v345 = vsub.f32 %v343, %v344
  %v346 = vand.u32 %v345, 4294901760
  %347 = vmatpush2.msra.mxu0 %v346
  %348 = vmatprep.subr.mxu0 0.0
  %v349 = vand.u32 %v43, 4294901760
  %v350 = vsub.f32 %v43, %v349
  %v351 = vand.u32 %v350, 4294901760
  %v352 = vsub.f32 %v350, %v351
  %v353 = vand.u32 %v352, 4294901760
  %354 = vmatpush2.msra.mxu0 %v353
  %355 = vmatprep.subr.mxu0 0.0
  %v356 = vand.u32 %v42, 4294901760
  %v357 = vsub.f32 %v42, %v356
  %v358 = vand.u32 %v357, 4294901760
  %v359 = vsub.f32 %v357, %v358
  %v360 = vand.u32 %v359, 4294901760
  %361 = vmatpush2.msra.mxu0 %v360
  %362 = vmatprep.subr.mxu0 0.0
  %v363 = vand.u32 %v41, 4294901760
  %v364 = vsub.f32 %v41, %v363
  %v365 = vand.u32 %v364, 4294901760
  %v366 = vsub.f32 %v364, %v365
  %v367 = vand.u32 %v366, 4294901760
  %368 = vmatpush2.msra.mxu0 %v367
  %369 = vmatprep.subr.mxu0 0.0
  %v370 = vand.u32 %v40, 4294901760
  %v371 = vsub.f32 %v40, %v370
  %v372 = vand.u32 %v371, 4294901760
  %v373 = vsub.f32 %v371, %v372
  %v374 = vand.u32 %v373, 4294901760
  %375 = vmatpush2.msra.mxu0 %v374
  %376 = vmatprep.subr.mxu0 0.0
  %v377 = vand.u32 %v39, 4294901760
  %v378 = vsub.f32 %v39, %v377
  %v379 = vand.u32 %v378, 4294901760
  %v380 = vsub.f32 %v378, %v379
  %v381 = vand.u32 %v380, 4294901760
  %382 = vmatpush2.msra.mxu0 %v381
  %383 = vmatprep.subr.mxu0 0.0
  %v384 = vand.u32 %v38, 4294901760
  %v385 = vsub.f32 %v38, %v384
  %v386 = vand.u32 %v385, 4294901760
  %v387 = vsub.f32 %v385, %v386
  %v388 = vand.u32 %v387, 4294901760
  %389 = vmatpush2.msra.mxu0 %v388
  %v390 = vand.u32 %v21, 4294901760
  %391 = vmatprep.mubr.f32.mxu0 %v390
  %v392 = vand.u32 %v19, 4294901760
  %393 = vmatmul.mubr.f32.gmra.mxu0 %v392
  %v394 = vpop.f32.mrf.mxu0
  %v395 = vadd.f32 %v163, %v394
  %v396 = vpop.f32.mrf.mxu0
  %397 = vdwg.mxu0
  %398 = vmatprep.subr.mxu0 0.0
  %v399 = vand.u32 %v37, 4294901760
  %v400 = vsub.f32 %v37, %v399
  %401 = vmatpush1.msra.mxu0 %v400
  %402 = vmatprep.subr.mxu0 0.0
  %v403 = vand.u32 %v36, 4294901760
  %v404 = vsub.f32 %v36, %v403
  %405 = vmatpush1.msra.mxu0 %v404
  %406 = vmatprep.subr.mxu0 0.0
  %v407 = vand.u32 %v35, 4294901760
  %v408 = vsub.f32 %v35, %v407
  %409 = vmatpush1.msra.mxu0 %v408
  %410 = vmatprep.subr.mxu0 0.0
  %v411 = vand.u32 %v34, 4294901760
  %v412 = vsub.f32 %v34, %v411
  %413 = vmatpush1.msra.mxu0 %v412
  %414 = vmatprep.subr.mxu0 0.0
  %v415 = vand.u32 %v33, 4294901760
  %v416 = vsub.f32 %v33, %v415
  %417 = vmatpush1.msra.mxu0 %v416
  %418 = vmatprep.subr.mxu0 0.0
  %v419 = vand.u32 %v32, 4294901760
  %v420 = vsub.f32 %v32, %v419
  %421 = vmatpush1.msra.mxu0 %v420
  %422 = vmatprep.subr.mxu0 0.0
  %v423 = vand.u32 %v31, 4294901760
  %v424 = vsub.f32 %v31, %v423
  %425 = vmatpush1.msra.mxu0 %v424
  %426 = vmatprep.subr.mxu0 0.0
  %v427 = vand.u32 %v30, 4294901760
  %v428 = vsub.f32 %v30, %v427
  %429 = vmatpush1.msra.mxu0 %v428
  %430 = vmatprep.subr.mxu0 0.0
  %v431 = vand.u32 %v29, 4294901760
  %v432 = vsub.f32 %v29, %v431
  %433 = vmatpush1.msra.mxu0 %v432
  %434 = vmatprep.subr.mxu0 0.0
  %v435 = vand.u32 %v28, 4294901760
  %v436 = vsub.f32 %v28, %v435
  %437 = vmatpush1.msra.mxu0 %v436
  %438 = vmatprep.subr.mxu0 0.0
  %v439 = vand.u32 %v27, 4294901760
  %v440 = vsub.f32 %v27, %v439
  %441 = vmatpush1.msra.mxu0 %v440
  %442 = vmatprep.subr.mxu0 0.0
  %v443 = vand.u32 %v26, 4294901760
  %v444 = vsub.f32 %v26, %v443
  %445 = vmatpush1.msra.mxu0 %v444
  %446 = vmatprep.subr.mxu0 0.0
  %v447 = vand.u32 %v25, 4294901760
  %v448 = vsub.f32 %v25, %v447
  %449 = vmatpush1.msra.mxu0 %v448
  %450 = vmatprep.subr.mxu0 0.0
  %v451 = vand.u32 %v24, 4294901760
  %v452 = vsub.f32 %v24, %v451
  %453 = vmatpush1.msra.mxu0 %v452
  %454 = vmatprep.subr.mxu0 0.0
  %v455 = vand.u32 %v23, 4294901760
  %v456 = vsub.f32 %v23, %v455
  %457 = vmatpush1.msra.mxu0 %v456
  %458 = vmatprep.subr.mxu0 0.0
  %v459 = vand.u32 %v22, 4294901760
  %v460 = vsub.f32 %v22, %v459
  %461 = vmatpush1.msra.mxu0 %v460
  %462 = vmatprep.subr.mxu0 0.0
  %v463 = vand.u32 %v53, 4294901760
  %v464 = vsub.f32 %v53, %v463
  %465 = vmatpush2.msra.mxu0 %v464
  %466 = vmatprep.subr.mxu0 0.0
  %v467 = vand.u32 %v52, 4294901760
  %v468 = vsub.f32 %v52, %v467
  %469 = vmatpush2.msra.mxu0 %v468
  %470 = vmatprep.subr.mxu0 0.0
  %v471 = vand.u32 %v51, 4294901760
  %v472 = vsub.f32 %v51, %v471
  %473 = vmatpush2.msra.mxu0 %v472
  %474 = vmatprep.subr.mxu0 0.0
  %v475 = vand.u32 %v50, 4294901760
  %v476 = vsub.f32 %v50, %v475
  %477 = vmatpush2.msra.mxu0 %v476
  %478 = vmatprep.subr.mxu0 0.0
  %v479 = vand.u32 %v49, 4294901760
  %v480 = vsub.f32 %v49, %v479
  %481 = vmatpush2.msra.mxu0 %v480
  %482 = vmatprep.subr.mxu0 0.0
  %v483 = vand.u32 %v48, 4294901760
  %v484 = vsub.f32 %v48, %v483
  %485 = vmatpush2.msra.mxu0 %v484
  %486 = vmatprep.subr.mxu0 0.0
  %v487 = vand.u32 %v47, 4294901760
  %v488 = vsub.f32 %v47, %v487
  %489 = vmatpush2.msra.mxu0 %v488
  %490 = vmatprep.subr.mxu0 0.0
  %v491 = vand.u32 %v46, 4294901760
  %v492 = vsub.f32 %v46, %v491
  %493 = vmatpush2.msra.mxu0 %v492
  %494 = vmatprep.subr.mxu0 0.0
  %v495 = vand.u32 %v45, 4294901760
  %v496 = vsub.f32 %v45, %v495
  %497 = vmatpush2.msra.mxu0 %v496
  %498 = vmatprep.subr.mxu0 0.0
  %v499 = vand.u32 %v44, 4294901760
  %v500 = vsub.f32 %v44, %v499
  %501 = vmatpush2.msra.mxu0 %v500
  %502 = vmatprep.subr.mxu0 0.0
  %v503 = vand.u32 %v43, 4294901760
  %v504 = vsub.f32 %v43, %v503
  %505 = vmatpush2.msra.mxu0 %v504
  %506 = vmatprep.subr.mxu0 0.0
  %v507 = vand.u32 %v42, 4294901760
  %v508 = vsub.f32 %v42, %v507
  %509 = vmatpush2.msra.mxu0 %v508
  %510 = vmatprep.subr.mxu0 0.0
  %v511 = vand.u32 %v41, 4294901760
  %v512 = vsub.f32 %v41, %v511
  %513 = vmatpush2.msra.mxu0 %v512
  %514 = vmatprep.subr.mxu0 0.0
  %v515 = vand.u32 %v40, 4294901760
  %v516 = vsub.f32 %v40, %v515
  %517 = vmatpush2.msra.mxu0 %v516
  %518 = vmatprep.subr.mxu0 0.0
  %v519 = vand.u32 %v39, 4294901760
  %v520 = vsub.f32 %v39, %v519
  %521 = vmatpush2.msra.mxu0 %v520
  %522 = vmatprep.subr.mxu0 0.0
  %v523 = vand.u32 %v38, 4294901760
  %v524 = vsub.f32 %v38, %v523
  %525 = vmatpush2.msra.mxu0 %v524
  %v526 = vand.u32 %v21, 4294901760
  %v527 = vsub.f32 %v21, %v526
  %528 = vmatprep.mubr.f32.mxu0 %v527
  %v529 = vand.u32 %v19, 4294901760
  %v530 = vsub.f32 %v19, %v529
  %531 = vmatmul.mubr.f32.gmra.mxu0 %v530
  %v532 = vpop.f32.mrf.mxu0
  %v533 = vadd.f32 %v395, %v532
  %v534 = vpop.f32.mrf.mxu0
  %535 = vdwg.mxu0
  %536 = vmatprep.subr.mxu0 0.0
  %v537 = vand.u32 %v37, 4294901760
  %538 = vmatpush1.msra.mxu0 %v537
  %539 = vmatprep.subr.mxu0 0.0
  %v540 = vand.u32 %v36, 4294901760
  %541 = vmatpush1.msra.mxu0 %v540
  %542 = vmatprep.subr.mxu0 0.0
  %v543 = vand.u32 %v35, 4294901760
  %544 = vmatpush1.msra.mxu0 %v543
  %545 = vmatprep.subr.mxu0 0.0
  %v546 = vand.u32 %v34, 4294901760
  %547 = vmatpush1.msra.mxu0 %v546
  %548 = vmatprep.subr.mxu0 0.0
  %v549 = vand.u32 %v33, 4294901760
  %550 = vmatpush1.msra.mxu0 %v549
  %551 = vmatprep.subr.mxu0 0.0
  %v552 = vand.u32 %v32, 4294901760
  %553 = vmatpush1.msra.mxu0 %v552
  %554 = vmatprep.subr.mxu0 0.0
  %v555 = vand.u32 %v31, 4294901760
  %556 = vmatpush1.msra.mxu0 %v555
  %557 = vmatprep.subr.mxu0 0.0
  %v558 = vand.u32 %v30, 4294901760
  %559 = vmatpush1.msra.mxu0 %v558
  %560 = vmatprep.subr.mxu0 0.0
  %v561 = vand.u32 %v29, 4294901760
  %562 = vmatpush1.msra.mxu0 %v561
  %563 = vmatprep.subr.mxu0 0.0
  %v564 = vand.u32 %v28, 4294901760
  %565 = vmatpush1.msra.mxu0 %v564
  %566 = vmatprep.subr.mxu0 0.0
  %v567 = vand.u32 %v27, 4294901760
  %568 = vmatpush1.msra.mxu0 %v567
  %569 = vmatprep.subr.mxu0 0.0
  %v570 = vand.u32 %v26, 4294901760
  %571 = vmatpush1.msra.mxu0 %v570
  %572 = vmatprep.subr.mxu0 0.0
  %v573 = vand.u32 %v25, 4294901760
  %574 = vmatpush1.msra.mxu0 %v573
  %575 = vmatprep.subr.mxu0 0.0
  %v576 = vand.u32 %v24, 4294901760
  %577 = vmatpush1.msra.mxu0 %v576
  %578 = vmatprep.subr.mxu0 0.0
  %v579 = vand.u32 %v23, 4294901760
  %580 = vmatpush1.msra.mxu0 %v579
  %581 = vmatprep.subr.mxu0 0.0
  %v582 = vand.u32 %v22, 4294901760
  %583 = vmatpush1.msra.mxu0 %v582
  %584 = vmatprep.subr.mxu0 0.0
  %v585 = vand.u32 %v53, 4294901760
  %586 = vmatpush2.msra.mxu0 %v585
  %587 = vmatprep.subr.mxu0 0.0
  %v588 = vand.u32 %v52, 4294901760
  %589 = vmatpush2.msra.mxu0 %v588
  %590 = vmatprep.subr.mxu0 0.0
  %v591 = vand.u32 %v51, 4294901760
  %592 = vmatpush2.msra.mxu0 %v591
  %593 = vmatprep.subr.mxu0 0.0
  %v594 = vand.u32 %v50, 4294901760
  %595 = vmatpush2.msra.mxu0 %v594
  %596 = vmatprep.subr.mxu0 0.0
  %v597 = vand.u32 %v49, 4294901760
  %598 = vmatpush2.msra.mxu0 %v597
  %599 = vmatprep.subr.mxu0 0.0
  %v600 = vand.u32 %v48, 4294901760
  %601 = vmatpush2.msra.mxu0 %v600
  %602 = vmatprep.subr.mxu0 0.0
  %v603 = vand.u32 %v47, 4294901760
  %604 = vmatpush2.msra.mxu0 %v603
  %605 = vmatprep.subr.mxu0 0.0
  %v606 = vand.u32 %v46, 4294901760
  %607 = vmatpush2.msra.mxu0 %v606
  %608 = vmatprep.subr.mxu0 0.0
  %v609 = vand.u32 %v45, 4294901760
  %610 = vmatpush2.msra.mxu0 %v609
  %611 = vmatprep.subr.mxu0 0.0
  %v612 = vand.u32 %v44, 4294901760
  %613 = vmatpush2.msra.mxu0 %v612
  %614 = vmatprep.subr.mxu0 0.0
  %v615 = vand.u32 %v43, 4294901760
  %616 = vmatpush2.msra.mxu0 %v615
  %617 = vmatprep.subr.mxu0 0.0
  %v618 = vand.u32 %v42, 4294901760
  %619 = vmatpush2.msra.mxu0 %v618
  %620 = vmatprep.subr.mxu0 0.0
  %v621 = vand.u32 %v41, 4294901760
  %622 = vmatpush2.msra.mxu0 %v621
  %623 = vmatprep.subr.mxu0 0.0
  %v624 = vand.u32 %v40, 4294901760
  %625 = vmatpush2.msra.mxu0 %v624
  %626 = vmatprep.subr.mxu0 0.0
  %v627 = vand.u32 %v39, 4294901760
  %628 = vmatpush2.msra.mxu0 %v627
  %629 = vmatprep.subr.mxu0 0.0
  %v630 = vand.u32 %v38, 4294901760
  %631 = vmatpush2.msra.mxu0 %v630
  %v632 = vand.u32 %v21, 4294901760
  %v633 = vsub.f32 %v21, %v632
  %v634 = vand.u32 %v633, 4294901760
  %635 = vmatprep.mubr.f32.mxu0 %v634
  %v636 = vand.u32 %v19, 4294901760
  %v637 = vsub.f32 %v19, %v636
  %v638 = vand.u32 %v637, 4294901760
  %639 = vmatmul.mubr.f32.gmra.mxu0 %v638
  %v640 = vpop.f32.mrf.mxu0
  %v641 = vadd.f32 %v533, %v640
  %v642 = vpop.f32.mrf.mxu0
  %643 = vdwg.mxu0
  %644 = vmatprep.subr.mxu0 0.0
  %v645 = vand.u32 %v37, 4294901760
  %v646 = vsub.f32 %v37, %v645
  %v647 = vand.u32 %v646, 4294901760
  %648 = vmatpush1.msra.mxu0 %v647
  %649 = vmatprep.subr.mxu0 0.0
  %v650 = vand.u32 %v36, 4294901760
  %v651 = vsub.f32 %v36, %v650
  %v652 = vand.u32 %v651, 4294901760
  %653 = vmatpush1.msra.mxu0 %v652
  %654 = vmatprep.subr.mxu0 0.0
  %v655 = vand.u32 %v35, 4294901760
  %v656 = vsub.f32 %v35, %v655
  %v657 = vand.u32 %v656, 4294901760
  %658 = vmatpush1.msra.mxu0 %v657
  %659 = vmatprep.subr.mxu0 0.0
  %v660 = vand.u32 %v34, 4294901760
  %v661 = vsub.f32 %v34, %v660
  %v662 = vand.u32 %v661, 4294901760
  %663 = vmatpush1.msra.mxu0 %v662
  %664 = vmatprep.subr.mxu0 0.0
  %v665 = vand.u32 %v33, 4294901760
  %v666 = vsub.f32 %v33, %v665
  %v667 = vand.u32 %v666, 4294901760
  %668 = vmatpush1.msra.mxu0 %v667
  %669 = vmatprep.subr.mxu0 0.0
  %v670 = vand.u32 %v32, 4294901760
  %v671 = vsub.f32 %v32, %v670
  %v672 = vand.u32 %v671, 4294901760
  %673 = vmatpush1.msra.mxu0 %v672
  %674 = vmatprep.subr.mxu0 0.0
  %v675 = vand.u32 %v31, 4294901760
  %v676 = vsub.f32 %v31, %v675
  %v677 = vand.u32 %v676, 4294901760
  %678 = vmatpush1.msra.mxu0 %v677
  %679 = vmatprep.subr.mxu0 0.0
  %v680 = vand.u32 %v30, 4294901760
  %v681 = vsub.f32 %v30, %v680
  %v682 = vand.u32 %v681, 4294901760
  %683 = vmatpush1.msra.mxu0 %v682
  %684 = vmatprep.subr.mxu0 0.0
  %v685 = vand.u32 %v29, 4294901760
  %v686 = vsub.f32 %v29, %v685
  %v687 = vand.u32 %v686, 4294901760
  %688 = vmatpush1.msra.mxu0 %v687
  %689 = vmatprep.subr.mxu0 0.0
  %v690 = vand.u32 %v28, 4294901760
  %v691 = vsub.f32 %v28, %v690
  %v692 = vand.u32 %v691, 4294901760
  %693 = vmatpush1.msra.mxu0 %v692
  %694 = vmatprep.subr.mxu0 0.0
  %v695 = vand.u32 %v27, 4294901760
  %v696 = vsub.f32 %v27, %v695
  %v697 = vand.u32 %v696, 4294901760
  %698 = vmatpush1.msra.mxu0 %v697
  %699 = vmatprep.subr.mxu0 0.0
  %v700 = vand.u32 %v26, 4294901760
  %v701 = vsub.f32 %v26, %v700
  %v702 = vand.u32 %v701, 4294901760
  %703 = vmatpush1.msra.mxu0 %v702
  %704 = vmatprep.subr.mxu0 0.0
  %v705 = vand.u32 %v25, 4294901760
  %v706 = vsub.f32 %v25, %v705
  %v707 = vand.u32 %v706, 4294901760
  %708 = vmatpush1.msra.mxu0 %v707
  %709 = vmatprep.subr.mxu0 0.0
  %v710 = vand.u32 %v24, 4294901760
  %v711 = vsub.f32 %v24, %v710
  %v712 = vand.u32 %v711, 4294901760
  %713 = vmatpush1.msra.mxu0 %v712
  %714 = vmatprep.subr.mxu0 0.0
  %v715 = vand.u32 %v23, 4294901760
  %v716 = vsub.f32 %v23, %v715
  %v717 = vand.u32 %v716, 4294901760
  %718 = vmatpush1.msra.mxu0 %v717
  %719 = vmatprep.subr.mxu0 0.0
  %v720 = vand.u32 %v22, 4294901760
  %v721 = vsub.f32 %v22, %v720
  %v722 = vand.u32 %v721, 4294901760
  %723 = vmatpush1.msra.mxu0 %v722
  %724 = vmatprep.subr.mxu0 0.0
  %v725 = vand.u32 %v53, 4294901760
  %v726 = vsub.f32 %v53, %v725
  %v727 = vand.u32 %v726, 4294901760
  %728 = vmatpush2.msra.mxu0 %v727
  %729 = vmatprep.subr.mxu0 0.0
  %v730 = vand.u32 %v52, 4294901760
  %v731 = vsub.f32 %v52, %v730
  %v732 = vand.u32 %v731, 4294901760
  %733 = vmatpush2.msra.mxu0 %v732
  %734 = vmatprep.subr.mxu0 0.0
  %v735 = vand.u32 %v51, 4294901760
  %v736 = vsub.f32 %v51, %v735
  %v737 = vand.u32 %v736, 4294901760
  %738 = vmatpush2.msra.mxu0 %v737
  %739 = vmatprep.subr.mxu0 0.0
  %v740 = vand.u32 %v50, 4294901760
  %v741 = vsub.f32 %v50, %v740
  %v742 = vand.u32 %v741, 4294901760
  %743 = vmatpush2.msra.mxu0 %v742
  %744 = vmatprep.subr.mxu0 0.0
  %v745 = vand.u32 %v49, 4294901760
  %v746 = vsub.f32 %v49, %v745
  %v747 = vand.u32 %v746, 4294901760
  %748 = vmatpush2.msra.mxu0 %v747
  %749 = vmatprep.subr.mxu0 0.0
  %v750 = vand.u32 %v48, 4294901760
  %v751 = vsub.f32 %v48, %v750
  %v752 = vand.u32 %v751, 4294901760
  %753 = vmatpush2.msra.mxu0 %v752
  %754 = vmatprep.subr.mxu0 0.0
  %v755 = vand.u32 %v47, 4294901760
  %v756 = vsub.f32 %v47, %v755
  %v757 = vand.u32 %v756, 4294901760
  %758 = vmatpush2.msra.mxu0 %v757
  %759 = vmatprep.subr.mxu0 0.0
  %v760 = vand.u32 %v46, 4294901760
  %v761 = vsub.f32 %v46, %v760
  %v762 = vand.u32 %v761, 4294901760
  %763 = vmatpush2.msra.mxu0 %v762
  %764 = vmatprep.subr.mxu0 0.0
  %v765 = vand.u32 %v45, 4294901760
  %v766 = vsub.f32 %v45, %v765
  %v767 = vand.u32 %v766, 4294901760
  %768 = vmatpush2.msra.mxu0 %v767
  %769 = vmatprep.subr.mxu0 0.0
  %v770 = vand.u32 %v44, 4294901760
  %v771 = vsub.f32 %v44, %v770
  %v772 = vand.u32 %v771, 4294901760
  %773 = vmatpush2.msra.mxu0 %v772
  %774 = vmatprep.subr.mxu0 0.0
  %v775 = vand.u32 %v43, 4294901760
  %v776 = vsub.f32 %v43, %v775
  %v777 = vand.u32 %v776, 4294901760
  %778 = vmatpush2.msra.mxu0 %v777
  %779 = vmatprep.subr.mxu0 0.0
  %v780 = vand.u32 %v42, 4294901760
  %v781 = vsub.f32 %v42, %v780
  %v782 = vand.u32 %v781, 4294901760
  %783 = vmatpush2.msra.mxu0 %v782
  %784 = vmatprep.subr.mxu0 0.0
  %v785 = vand.u32 %v41, 4294901760
  %v786 = vsub.f32 %v41, %v785
  %v787 = vand.u32 %v786, 4294901760
  %788 = vmatpush2.msra.mxu0 %v787
  %789 = vmatprep.subr.mxu0 0.0
  %v790 = vand.u32 %v40, 4294901760
  %v791 = vsub.f32 %v40, %v790
  %v792 = vand.u32 %v791, 4294901760
  %793 = vmatpush2.msra.mxu0 %v792
  %794 = vmatprep.subr.mxu0 0.0
  %v795 = vand.u32 %v39, 4294901760
  %v796 = vsub.f32 %v39, %v795
  %v797 = vand.u32 %v796, 4294901760
  %798 = vmatpush2.msra.mxu0 %v797
  %799 = vmatprep.subr.mxu0 0.0
  %v800 = vand.u32 %v38, 4294901760
  %v801 = vsub.f32 %v38, %v800
  %v802 = vand.u32 %v801, 4294901760
  %803 = vmatpush2.msra.mxu0 %v802
  %v804 = vand.u32 %v21, 4294901760
  %805 = vmatprep.mubr.f32.mxu0 %v804
  %v806 = vand.u32 %v19, 4294901760
  %807 = vmatmul.mubr.f32.gmra.mxu0 %v806
  %v808 = vpop.f32.mrf.mxu0
  %v809 = vadd.f32 %v641, %v808
  %v810 = vpop.f32.mrf.mxu0
  %811 = vdwg.mxu0
  %812 = vmatprep.subr.mxu0 0.0
  %v813 = vand.u32 %v37, 4294901760
  %814 = vmatpush1.msra.mxu0 %v813
  %815 = vmatprep.subr.mxu0 0.0
  %v816 = vand.u32 %v36, 4294901760
  %817 = vmatpush1.msra.mxu0 %v816
  %818 = vmatprep.subr.mxu0 0.0
  %v819 = vand.u32 %v35, 4294901760
  %820 = vmatpush1.msra.mxu0 %v819
  %821 = vmatprep.subr.mxu0 0.0
  %v822 = vand.u32 %v34, 4294901760
  %823 = vmatpush1.msra.mxu0 %v822
  %824 = vmatprep.subr.mxu0 0.0
  %v825 = vand.u32 %v33, 4294901760
  %826 = vmatpush1.msra.mxu0 %v825
  %827 = vmatprep.subr.mxu0 0.0
  %v828 = vand.u32 %v32, 4294901760
  %829 = vmatpush1.msra.mxu0 %v828
  %830 = vmatprep.subr.mxu0 0.0
  %v831 = vand.u32 %v31, 4294901760
  %832 = vmatpush1.msra.mxu0 %v831
  %833 = vmatprep.subr.mxu0 0.0
  %v834 = vand.u32 %v30, 4294901760
  %835 = vmatpush1.msra.mxu0 %v834
  %836 = vmatprep.subr.mxu0 0.0
  %v837 = vand.u32 %v29, 4294901760
  %838 = vmatpush1.msra.mxu0 %v837
  %839 = vmatprep.subr.mxu0 0.0
  %v840 = vand.u32 %v28, 4294901760
  %841 = vmatpush1.msra.mxu0 %v840
  %842 = vmatprep.subr.mxu0 0.0
  %v843 = vand.u32 %v27, 4294901760
  %844 = vmatpush1.msra.mxu0 %v843
  %845 = vmatprep.subr.mxu0 0.0
  %v846 = vand.u32 %v26, 4294901760
  %847 = vmatpush1.msra.mxu0 %v846
  %848 = vmatprep.subr.mxu0 0.0
  %v849 = vand.u32 %v25, 4294901760
  %850 = vmatpush1.msra.mxu0 %v849
  %851 = vmatprep.subr.mxu0 0.0
  %v852 = vand.u32 %v24, 4294901760
  %853 = vmatpush1.msra.mxu0 %v852
  %854 = vmatprep.subr.mxu0 0.0
  %v855 = vand.u32 %v23, 4294901760
  %856 = vmatpush1.msra.mxu0 %v855
  %857 = vmatprep.subr.mxu0 0.0
  %v858 = vand.u32 %v22, 4294901760
  %859 = vmatpush1.msra.mxu0 %v858
  %860 = vmatprep.subr.mxu0 0.0
  %v861 = vand.u32 %v53, 4294901760
  %862 = vmatpush2.msra.mxu0 %v861
  %863 = vmatprep.subr.mxu0 0.0
  %v864 = vand.u32 %v52, 4294901760
  %865 = vmatpush2.msra.mxu0 %v864
  %866 = vmatprep.subr.mxu0 0.0
  %v867 = vand.u32 %v51, 4294901760
  %868 = vmatpush2.msra.mxu0 %v867
  %869 = vmatprep.subr.mxu0 0.0
  %v870 = vand.u32 %v50, 4294901760
  %871 = vmatpush2.msra.mxu0 %v870
  %872 = vmatprep.subr.mxu0 0.0
  %v873 = vand.u32 %v49, 4294901760
  %874 = vmatpush2.msra.mxu0 %v873
  %875 = vmatprep.subr.mxu0 0.0
  %v876 = vand.u32 %v48, 4294901760
  %877 = vmatpush2.msra.mxu0 %v876
  %878 = vmatprep.subr.mxu0 0.0
  %v879 = vand.u32 %v47, 4294901760
  %880 = vmatpush2.msra.mxu0 %v879
  %881 = vmatprep.subr.mxu0 0.0
  %v882 = vand.u32 %v46, 4294901760
  %883 = vmatpush2.msra.mxu0 %v882
  %884 = vmatprep.subr.mxu0 0.0
  %v885 = vand.u32 %v45, 4294901760
  %886 = vmatpush2.msra.mxu0 %v885
  %887 = vmatprep.subr.mxu0 0.0
  %v888 = vand.u32 %v44, 4294901760
  %889 = vmatpush2.msra.mxu0 %v888
  %890 = vmatprep.subr.mxu0 0.0
  %v891 = vand.u32 %v43, 4294901760
  %892 = vmatpush2.msra.mxu0 %v891
  %893 = vmatprep.subr.mxu0 0.0
  %v894 = vand.u32 %v42, 4294901760
  %895 = vmatpush2.msra.mxu0 %v894
  %896 = vmatprep.subr.mxu0 0.0
  %v897 = vand.u32 %v41, 4294901760
  %898 = vmatpush2.msra.mxu0 %v897
  %899 = vmatprep.subr.mxu0 0.0
  %v900 = vand.u32 %v40, 4294901760
  %901 = vmatpush2.msra.mxu0 %v900
  %902 = vmatprep.subr.mxu0 0.0
  %v903 = vand.u32 %v39, 4294901760
  %904 = vmatpush2.msra.mxu0 %v903
  %905 = vmatprep.subr.mxu0 0.0
  %v906 = vand.u32 %v38, 4294901760
  %907 = vmatpush2.msra.mxu0 %v906
  %v908 = vand.u32 %v21, 4294901760
  %909 = vmatprep.mubr.f32.mxu0 %v908
  %v910 = vand.u32 %v19, 4294901760
  %911 = vmatmul.mubr.f32.gmra.mxu0 %v910
  %v912 = vpop.f32.mrf.mxu0
  %v913 = vadd.f32 %v809, %v912
  %v914 = vpop.f32.mrf.mxu0
  %915 = vdwg.mxu0
  %v916 = vrcp.pop %v913
  %v917 = vmul.f32 0.00390625, %v916
  %919 = vset.pattern.permute.xlu0 2
  %920 = vperm.xlu0 %919, %v917
  %v921 = vpop.permute.xlu0 %920
  %v923 = vmul.f32 %v913, %v921
  %vm924 = vcmask 15360
  %925 = vst.msk [vmem:[%s2] sm:$0xff] %vm924, %v923
  // Predicated region
  $region10: #{tpu_custom_call.1} parent=0 // pred_check
    _
  $region11: #{tpu_custom_call.1} parent=0 // pred_check_branch
    %927 = sbr.rel (0) target = $region13
  $region12: #{tpu_custom_call.1} parent=0 // pred_region
    _
  $region13: #{tpu_custom_call.1} parent=0 // pred_fallthru
    _
  // Predicated region
  $region14: #{tpu_custom_call.1} parent=0 // pred_check
    _
  $region15: #{tpu_custom_call.1} parent=0 // pred_check_branch
    %929 = sbr.rel (0) target = $region17
  $region16: #{tpu_custom_call.1} parent=0 // pred_region
    _
  $region17: #{tpu_custom_call.1} parent=0 // pred_fallthru
    _

</llo_original>
